<compile_context>
chip_gen: v6e
topology: v6e:2x2x1
jax: 0.10.0
libtpu: 0.0.40
codegen_flags: <defaults>
</compile_context>

<pallas_src>
import jax
import jax.numpy as jnp
from jax.experimental import pallas as pl
from jax.experimental.pallas import tpu as pltpu


def rnn_kernel(xpre_ref, h0_ref, whh_ref, whop_ref, bop_ref,
               y_ref, hout_ref, hall_ref):
    """Single invocation (no grid): whole sequence recurrence runs in-kernel.

    Shapes:
      xpre_ref: (seq, B, H)   precomputed w_xh[token] + b_h
      h0_ref:   (B, H)        initial hidden state
      whh_ref:  (H, H)
      whop_ref: (H, Vpad)     output projection, vocab padded to a multiple of 128
      bop_ref:  (1, Vpad)
      y_ref:    (seq*B, Vpad) lane-dense logits, row index = t*B + b
      hout_ref: (B, H)        final hidden state (written once)
      hall_ref: VMEM scratch (seq*B, H) collecting every h_t
    """
    seq, bsz, _ = xpre_ref.shape
    whh = whh_ref[...]                      # hoist weight load out of the loop
    h = h0_ref[...]

    # seq is small & static here -> fully unrolled recurrence; only one
    # (B,H)x(H,H) dot sits on the serial critical path per step.
    # For long sequences, switch to lax.fori_loop(..., unroll=True) with a
    # dynamic pl.ds store (same structure).
    for t in range(seq):
        h = jnp.tanh(
            jnp.dot(h, whh, preferred_element_type=jnp.float32) + xpre_ref[t])
        hall_ref[pl.ds(t * bsz, bsz), :] = h

    hout_ref[...] = h                       # single final-state store

    # Deferred output projection: one big, lane-dense MXU matmul over all
    # (seq*B) hidden rows instead of seq tiny per-step matmuls.
    y_ref[...] = (
        jnp.dot(hall_ref[...], whop_ref[...], preferred_element_type=jnp.float32)
        + bop_ref[...])


def rnn_forward(X_tokens, status, w_xh, w_hh, w_ho, b_h, b_o):
    """X_tokens: (batch, seq) int32; status: (batch, hidden) f32."""
    batch, seq = X_tokens.shape
    vocab = w_xh.shape[0]
    hidden = w_hh.shape[0]
    vocab_pad = ((vocab + 127) // 128) * 128   # lane-dense output width

    # Glue in plain JAX (replaces the old one-hot glue): embedding lookup is
    # exactly one_hot(tok) @ w_xh; fold the hidden bias in as well so the
    # per-step kernel work is only h @ w_hh (+ precomputed term).
    xpre = jnp.take(w_xh, X_tokens.T, axis=0) + b_h[None, None, :]  # (seq, B, H)

    # Zero-pad the output projection to a multiple of 128 lanes -> unmasked
    # stores for Y inside the kernel; padded columns produce exact zeros.
    w_ho_p = jnp.pad(w_ho, ((0, 0), (0, vocab_pad - vocab)))
    b_o_p = jnp.pad(b_o, (0, vocab_pad - vocab)).reshape(1, vocab_pad)

    vmem = pltpu.MemorySpace.VMEM
    y_flat, h_final = pl.pallas_call(
        rnn_kernel,
        out_shape=(
            jax.ShapeDtypeStruct((seq * batch, vocab_pad), jnp.float32),
            jax.ShapeDtypeStruct((batch, hidden), jnp.float32),
        ),
        in_specs=[
            pl.BlockSpec(memory_space=vmem),   # xpre
            pl.BlockSpec(memory_space=vmem),   # h0
            pl.BlockSpec(memory_space=vmem),   # w_hh
            pl.BlockSpec(memory_space=vmem),   # w_ho (padded)
            pl.BlockSpec(memory_space=vmem),   # b_o (padded)
        ],
        out_specs=(
            pl.BlockSpec(memory_space=vmem),   # Y (flat, lane-dense)
            pl.BlockSpec(memory_space=vmem),   # final hidden state
        ),
        scratch_shapes=[pltpu.VMEM((seq * batch, hidden), jnp.float32)],
    )(xpre, status, w_hh, w_ho_p, b_o_p)

    Y = y_flat[:, :vocab].reshape(seq, batch, vocab)
    return Y, h_final


def reference_forward(X_tokens, status, w_xh, w_hh, w_ho, b_h, b_o):
    """Faithful re-implementation of the PyTorch forward (one-hot formulation)."""
    hp = jax.lax.Precision.HIGHEST
    x_onehot = jax.nn.one_hot(X_tokens.T, w_xh.shape[0], dtype=jnp.float32)
    Ys = []
    h = status
    for t in range(x_onehot.shape[0]):
        h = jnp.tanh(jnp.dot(h, w_hh, precision=hp)
                     + jnp.dot(x_onehot[t], w_xh, precision=hp) + b_h)
        Ys.append((jnp.dot(h, w_ho, precision=hp) + b_o)[None])
    return jnp.concatenate(Ys, axis=0), h


if __name__ == "__main__":
    vocab_size = 32
    num_hiddens = 32
    batch_size = 2
    seq_len = 8

    key = jax.random.PRNGKey(0)
    k1, k2, k3, k4, k5, k6 = jax.random.split(key, 6)

    # Parameters: N(0, 0.01) weights (matching torch.normal(0, 0.01, ...)).
    # Biases are given small nonzero values here so the bias paths are checked.
    w_xh = 0.01 * jax.random.normal(k1, (vocab_size, num_hiddens), jnp.float32)
    w_hh = 0.01 * jax.random.normal(k2, (num_hiddens, num_hiddens), jnp.float32)
    w_ho = 0.01 * jax.random.normal(k3, (num_hiddens, vocab_size), jnp.float32)
    b_h = 0.01 * jax.random.normal(k5, (num_hiddens,), jnp.float32)
    b_o = 0.01 * jax.random.normal(k6, (vocab_size,), jnp.float32)

    # Token input (batch, seq) and zero initial state (init_status).
    X = jax.random.randint(k4, (batch_size, seq_len), 0, vocab_size, jnp.int32)
    status0 = jnp.zeros((batch_size, num_hiddens), jnp.float32)

    Y, h_final = rnn_forward(X, status0, w_xh, w_hh, w_ho, b_h, b_o)
    Y = jax.block_until_ready(Y)
    h_final = jax.block_until_ready(h_final)

    Y_ref, h_ref = reference_forward(X, status0, w_xh, w_hh, w_ho, b_h, b_o)
    assert Y.shape == (seq_len, batch_size, vocab_size)
    assert h_final.shape == (batch_size, num_hiddens)
    assert jnp.allclose(Y, Y_ref, atol=1e-4, rtol=1e-4)
    assert jnp.allclose(h_final, h_ref, atol=1e-4, rtol=1e-4)

    print("KERNEL_OK")
</pallas_src>

<mosaic_0001>
module attributes {stable_mosaic.version = 11 : i64} {
  func.func @rnn_kernel(%arg0: memref<8x2x32xf32, #tpu.memory_space<vmem>>, %arg1: memref<2x32xf32, #tpu.memory_space<vmem>>, %arg2: memref<32x32xf32, #tpu.memory_space<vmem>>, %arg3: memref<32x128xf32, #tpu.memory_space<vmem>>, %arg4: memref<1x128xf32, #tpu.memory_space<vmem>>, %arg5: memref<16x128xf32, #tpu.memory_space<vmem>>, %arg6: memref<2x32xf32, #tpu.memory_space<vmem>>, %arg7: memref<16x32xf32, #tpu.memory_space<vmem>>) attributes {dimension_semantics = [], scalar_prefetch = 0 : i64, scratch_operands = 1 : i64, tpu.core_type = #tpu.core_type<tc>} {
    %c0 = arith.constant 0 : index
    %c0_0 = arith.constant 0 : index
    %0 = vector.load %arg2[%c0, %c0_0] : memref<32x32xf32, #tpu.memory_space<vmem>>, vector<32x32xf32>
    %c0_1 = arith.constant 0 : index
    %c0_2 = arith.constant 0 : index
    %1 = vector.load %arg1[%c0_1, %c0_2] : memref<2x32xf32, #tpu.memory_space<vmem>>, vector<2x32xf32>
    %cst = arith.constant dense<0.000000e+00> : vector<2x32xf32>
    %2 = tpu.matmul %1, %0, %cst {dimension_numbers = #tpu.dot_dimension_numbers<[1], [0], [0], [1], [0, 0, 1, 1], [], []>} : vector<2x32xf32>, vector<32x32xf32>, vector<2x32xf32> -> vector<2x32xf32>
    %c0_3 = arith.constant 0 : index
    %c0_4 = arith.constant 0 : index
    %c0_5 = arith.constant 0 : index
    %3 = vector.load %arg0[%c0_3, %c0_4, %c0_5] : memref<8x2x32xf32, #tpu.memory_space<vmem>>, vector<1x2x32xf32>
    %4 = vector.shape_cast %3 : vector<1x2x32xf32> to vector<2x32xf32>
    %5 = arith.addf %2, %4 : vector<2x32xf32>
    %6 = math.tanh %5 : vector<2x32xf32>
    %c0_6 = arith.constant 0 : index
    %c0_7 = arith.constant 0 : index
    %7 = vector.load %arg7[%c0_6, %c0_7] : memref<16x32xf32, #tpu.memory_space<vmem>>, vector<2x32xf32>
    tpu.vector_store %arg7[%c0_6, %c0_7], %6 {strides = array<i32>} : memref<16x32xf32, #tpu.memory_space<vmem>>, vector<2x32xf32>,
    %cst_8 = arith.constant dense<0.000000e+00> : vector<2x32xf32>
    %8 = tpu.matmul %6, %0, %cst_8 {dimension_numbers = #tpu.dot_dimension_numbers<[1], [0], [0], [1], [0, 0, 1, 1], [], []>} : vector<2x32xf32>, vector<32x32xf32>, vector<2x32xf32> -> vector<2x32xf32>
    %c1 = arith.constant 1 : index
    %c0_9 = arith.constant 0 : index
    %c0_10 = arith.constant 0 : index
    %9 = vector.load %arg0[%c1, %c0_9, %c0_10] : memref<8x2x32xf32, #tpu.memory_space<vmem>>, vector<1x2x32xf32>
    %10 = vector.shape_cast %9 : vector<1x2x32xf32> to vector<2x32xf32>
    %11 = arith.addf %8, %10 : vector<2x32xf32>
    %12 = math.tanh %11 : vector<2x32xf32>
    %c2 = arith.constant 2 : index
    %c0_11 = arith.constant 0 : index
    %13 = vector.load %arg7[%c2, %c0_11] : memref<16x32xf32, #tpu.memory_space<vmem>>, vector<2x32xf32>
    tpu.vector_store %arg7[%c2, %c0_11], %12 {strides = array<i32>} : memref<16x32xf32, #tpu.memory_space<vmem>>, vector<2x32xf32>,
    %cst_12 = arith.constant dense<0.000000e+00> : vector<2x32xf32>
    %14 = tpu.matmul %12, %0, %cst_12 {dimension_numbers = #tpu.dot_dimension_numbers<[1], [0], [0], [1], [0, 0, 1, 1], [], []>} : vector<2x32xf32>, vector<32x32xf32>, vector<2x32xf32> -> vector<2x32xf32>
    %c2_13 = arith.constant 2 : index
    %c0_14 = arith.constant 0 : index
    %c0_15 = arith.constant 0 : index
    %15 = vector.load %arg0[%c2_13, %c0_14, %c0_15] : memref<8x2x32xf32, #tpu.memory_space<vmem>>, vector<1x2x32xf32>
    %16 = vector.shape_cast %15 : vector<1x2x32xf32> to vector<2x32xf32>
    %17 = arith.addf %14, %16 : vector<2x32xf32>
    %18 = math.tanh %17 : vector<2x32xf32>
    %c4 = arith.constant 4 : index
    %c0_16 = arith.constant 0 : index
    %19 = vector.load %arg7[%c4, %c0_16] : memref<16x32xf32, #tpu.memory_space<vmem>>, vector<2x32xf32>
    tpu.vector_store %arg7[%c4, %c0_16], %18 {strides = array<i32>} : memref<16x32xf32, #tpu.memory_space<vmem>>, vector<2x32xf32>,
    %cst_17 = arith.constant dense<0.000000e+00> : vector<2x32xf32>
    %20 = tpu.matmul %18, %0, %cst_17 {dimension_numbers = #tpu.dot_dimension_numbers<[1], [0], [0], [1], [0, 0, 1, 1], [], []>} : vector<2x32xf32>, vector<32x32xf32>, vector<2x32xf32> -> vector<2x32xf32>
    %c3 = arith.constant 3 : index
    %c0_18 = arith.constant 0 : index
    %c0_19 = arith.constant 0 : index
    %21 = vector.load %arg0[%c3, %c0_18, %c0_19] : memref<8x2x32xf32, #tpu.memory_space<vmem>>, vector<1x2x32xf32>
    %22 = vector.shape_cast %21 : vector<1x2x32xf32> to vector<2x32xf32>
    %23 = arith.addf %20, %22 : vector<2x32xf32>
    %24 = math.tanh %23 : vector<2x32xf32>
    %c6 = arith.constant 6 : index
    %c0_20 = arith.constant 0 : index
    %25 = vector.load %arg7[%c6, %c0_20] : memref<16x32xf32, #tpu.memory_space<vmem>>, vector<2x32xf32>
    tpu.vector_store %arg7[%c6, %c0_20], %24 {strides = array<i32>} : memref<16x32xf32, #tpu.memory_space<vmem>>, vector<2x32xf32>,
    %cst_21 = arith.constant dense<0.000000e+00> : vector<2x32xf32>
    %26 = tpu.matmul %24, %0, %cst_21 {dimension_numbers = #tpu.dot_dimension_numbers<[1], [0], [0], [1], [0, 0, 1, 1], [], []>} : vector<2x32xf32>, vector<32x32xf32>, vector<2x32xf32> -> vector<2x32xf32>
    %c4_22 = arith.constant 4 : index
    %c0_23 = arith.constant 0 : index
    %c0_24 = arith.constant 0 : index
    %27 = vector.load %arg0[%c4_22, %c0_23, %c0_24] : memref<8x2x32xf32, #tpu.memory_space<vmem>>, vector<1x2x32xf32>
    %28 = vector.shape_cast %27 : vector<1x2x32xf32> to vector<2x32xf32>
    %29 = arith.addf %26, %28 : vector<2x32xf32>
    %30 = math.tanh %29 : vector<2x32xf32>
    %c8 = arith.constant 8 : index
    %c0_25 = arith.constant 0 : index
    %31 = vector.load %arg7[%c8, %c0_25] : memref<16x32xf32, #tpu.memory_space<vmem>>, vector<2x32xf32>
    tpu.vector_store %arg7[%c8, %c0_25], %30 {strides = array<i32>} : memref<16x32xf32, #tpu.memory_space<vmem>>, vector<2x32xf32>,
    %cst_26 = arith.constant dense<0.000000e+00> : vector<2x32xf32>
    %32 = tpu.matmul %30, %0, %cst_26 {dimension_numbers = #tpu.dot_dimension_numbers<[1], [0], [0], [1], [0, 0, 1, 1], [], []>} : vector<2x32xf32>, vector<32x32xf32>, vector<2x32xf32> -> vector<2x32xf32>
    %c5 = arith.constant 5 : index
    %c0_27 = arith.constant 0 : index
    %c0_28 = arith.constant 0 : index
    %33 = vector.load %arg0[%c5, %c0_27, %c0_28] : memref<8x2x32xf32, #tpu.memory_space<vmem>>, vector<1x2x32xf32>
    %34 = vector.shape_cast %33 : vector<1x2x32xf32> to vector<2x32xf32>
    %35 = arith.addf %32, %34 : vector<2x32xf32>
    %36 = math.tanh %35 : vector<2x32xf32>
    %c10 = arith.constant 10 : index
    %c0_29 = arith.constant 0 : index
    %37 = vector.load %arg7[%c10, %c0_29] : memref<16x32xf32, #tpu.memory_space<vmem>>, vector<2x32xf32>
    tpu.vector_store %arg7[%c10, %c0_29], %36 {strides = array<i32>} : memref<16x32xf32, #tpu.memory_space<vmem>>, vector<2x32xf32>,
    %cst_30 = arith.constant dense<0.000000e+00> : vector<2x32xf32>
    %38 = tpu.matmul %36, %0, %cst_30 {dimension_numbers = #tpu.dot_dimension_numbers<[1], [0], [0], [1], [0, 0, 1, 1], [], []>} : vector<2x32xf32>, vector<32x32xf32>, vector<2x32xf32> -> vector<2x32xf32>
    %c6_31 = arith.constant 6 : index
    %c0_32 = arith.constant 0 : index
    %c0_33 = arith.constant 0 : index
    %39 = vector.load %arg0[%c6_31, %c0_32, %c0_33] : memref<8x2x32xf32, #tpu.memory_space<vmem>>, vector<1x2x32xf32>
    %40 = vector.shape_cast %39 : vector<1x2x32xf32> to vector<2x32xf32>
    %41 = arith.addf %38, %40 : vector<2x32xf32>
    %42 = math.tanh %41 : vector<2x32xf32>
    %c12 = arith.constant 12 : index
    %c0_34 = arith.constant 0 : index
    %43 = vector.load %arg7[%c12, %c0_34] : memref<16x32xf32, #tpu.memory_space<vmem>>, vector<2x32xf32>
    tpu.vector_store %arg7[%c12, %c0_34], %42 {strides = array<i32>} : memref<16x32xf32, #tpu.memory_space<vmem>>, vector<2x32xf32>,
    %cst_35 = arith.constant dense<0.000000e+00> : vector<2x32xf32>
    %44 = tpu.matmul %42, %0, %cst_35 {dimension_numbers = #tpu.dot_dimension_numbers<[1], [0], [0], [1], [0, 0, 1, 1], [], []>} : vector<2x32xf32>, vector<32x32xf32>, vector<2x32xf32> -> vector<2x32xf32>
    %c7 = arith.constant 7 : index
    %c0_36 = arith.constant 0 : index
    %c0_37 = arith.constant 0 : index
    %45 = vector.load %arg0[%c7, %c0_36, %c0_37] : memref<8x2x32xf32, #tpu.memory_space<vmem>>, vector<1x2x32xf32>
    %46 = vector.shape_cast %45 : vector<1x2x32xf32> to vector<2x32xf32>
    %47 = arith.addf %44, %46 : vector<2x32xf32>
    %48 = math.tanh %47 : vector<2x32xf32>
    %c14 = arith.constant 14 : index
    %c0_38 = arith.constant 0 : index
    %49 = vector.load %arg7[%c14, %c0_38] : memref<16x32xf32, #tpu.memory_space<vmem>>, vector<2x32xf32>
    tpu.vector_store %arg7[%c14, %c0_38], %48 {strides = array<i32>} : memref<16x32xf32, #tpu.memory_space<vmem>>, vector<2x32xf32>,
    %c0_39 = arith.constant 0 : index
    %c0_40 = arith.constant 0 : index
    %50 = vector.load %arg6[%c0_39, %c0_40] : memref<2x32xf32, #tpu.memory_space<vmem>>, vector<2x32xf32>
    tpu.vector_store %arg6[%c0_39, %c0_40], %48 {strides = array<i32>} : memref<2x32xf32, #tpu.memory_space<vmem>>, vector<2x32xf32>,
    %c0_41 = arith.constant 0 : index
    %c0_42 = arith.constant 0 : index
    %51 = vector.load %arg7[%c0_41, %c0_42] : memref<16x32xf32, #tpu.memory_space<vmem>>, vector<16x32xf32>
    %c0_43 = arith.constant 0 : index
    %c0_44 = arith.constant 0 : index
    %52 = vector.load %arg3[%c0_43, %c0_44] : memref<32x128xf32, #tpu.memory_space<vmem>>, vector<32x128xf32>
    %cst_45 = arith.constant dense<0.000000e+00> : vector<16x128xf32>
    %53 = tpu.matmul %51, %52, %cst_45 {dimension_numbers = #tpu.dot_dimension_numbers<[1], [0], [0], [1], [0, 0, 1, 1], [], []>} : vector<16x32xf32>, vector<32x128xf32>, vector<16x128xf32> -> vector<16x128xf32>
    %c0_46 = arith.constant 0 : index
    %c0_47 = arith.constant 0 : index
    %54 = vector.load %arg4[%c0_46, %c0_47] : memref<1x128xf32, #tpu.memory_space<vmem>>, vector<1x128xf32>
    %55 = vector.broadcast %54 : vector<1x128xf32> to vector<16x128xf32>
    %56 = arith.addf %53, %55 : vector<16x128xf32>
    %c0_48 = arith.constant 0 : index
    %c0_49 = arith.constant 0 : index
    %57 = vector.load %arg5[%c0_48, %c0_49] : memref<16x128xf32, #tpu.memory_space<vmem>>, vector<16x128xf32>
    tpu.vector_store %arg5[%c0_48, %c0_49], %56 {strides = array<i32>} : memref<16x128xf32, #tpu.memory_space<vmem>>, vector<16x128xf32>,
    return
  }
}

</mosaic_0001>

<llo_original>
// kernel: tpu_custom_call.1
$region0: #{tpu_custom_call.1}
  #allocation0 [shape = 'u32[]', space=smem, size = 0x4, offset = 0x4, fixed_abs, tag = 'smem constant byte address 0x4 - core index']
  #allocation1 [shape = 'u32[144,128]{1,0:T(1,128)}', space=vmem, size = 0x12000, scoped, tag = 'internal scratch']
  #allocation2 [shape = 'f32[16,32]{1,0:T(8,128)}', space=vmem, size = 0x2000, scoped, tag = 'scratch operand']
  %s0 = inlined_call_operand.hbm [shape: f32[8,2,32], index: 0, kind: input, shape index: {}]
  %s1 = inlined_call_operand.hbm [shape: f32[2,32], index: 1, kind: input, shape index: {}]
  %s2 = inlined_call_operand.hbm [shape: f32[32,32], index: 2, kind: input, shape index: {}]
  %s3 = inlined_call_operand.hbm [shape: f32[32,128], index: 3, kind: input, shape index: {}]
  %s4 = inlined_call_operand.vmem [shape: f32[1,128], index: 4, kind: input, shape index: {}]
  %s5 = inlined_call_operand.hbm [shape: f32[16,128], index: 5, kind: output, shape index: {0}]
  %s6 = inlined_call_operand.hbm [shape: f32[2,32], index: 6, kind: output, shape index: {1}]
  %7 = xla_tuple %s5, %s6
  %s8 = sld [smem:[#allocation0]]
  $region54: #{tpu_custom_call.1} parent=0
    _
  %s10 = ssub.s32 1, %s8
  %s11 = scalar_select 0, %s10, %s8
  $region1: #{tpu_custom_call.1} parent=0
    #allocation3 [shape = 'u8[8192]{0}', space=vmem, size = 0x2000, scoped, tag = 'input window, operand 0, single buffered']
    #allocation4 [shape = 's32[1]{0}', space=sflag, size = 0x4, scoped, tag = 'scoped memory for tpu_custom_call.1']
    #allocation5 [shape = 's32[1]{0}', space=sflag, size = 0x4, scoped, tag = 'scoped memory for tpu_custom_call.1']
    #allocation6 [shape = 'u8[1024]{0}', space=vmem, size = 0x400, scoped, tag = 'input window, operand 1, single buffered']
    #allocation7 [shape = 's32[1]{0}', space=sflag, size = 0x4, scoped, tag = 'scoped memory for tpu_custom_call.1']
    #allocation8 [shape = 'u8[16384]{0}', space=vmem, size = 0x4000, scoped, tag = 'input window, operand 2, single buffered']
    #allocation9 [shape = 'u8[16384]{0}', space=vmem, size = 0x4000, scoped, tag = 'input window, operand 3, single buffered']
    #allocation10 [shape = 's32[1]{0}', space=sflag, size = 0x4, scoped, tag = 'scoped memory for tpu_custom_call.1']
    #allocation11 [shape = 'u8[8192]{0}', space=vmem, size = 0x2000, scoped, tag = 'output window, operand 0, single buffered']
    #allocation12 [shape = 'u8[1024]{0}', space=vmem, size = 0x400, scoped, tag = 'output window, operand 1, single buffered']
    #allocation13 [shape = 's32[1]{0}', space=sflag, size = 0x4, scoped, tag = 'scoped memory for tpu_custom_call.1']
    %12 = vsyncpa [#allocation4], 0
    %13 = vsyncpa [#allocation7], 0
    %14 = vsyncpa [#allocation10], 0
    %15 = vsyncpa [#allocation5], 0
    %16 = vsyncpa [#allocation13], 0
    // Predicated region
    $region2: #{tpu_custom_call.1} parent=1 // pred_check
      _
    $region3: #{tpu_custom_call.1} parent=1 // pred_check_branch
      %18 = sbr.rel (0) target = $region5
    $region4: #{tpu_custom_call.1} parent=1 // pred_region
      %s20 = ssub.s32 256, 256
      %21 = vsyncadd [#allocation4], %s20
      %s22 = sshll.u32 [#allocation3], 4
      %s23 = int_to_ptr.vmem [resolvable:$true] %s22
      %28 = dma.hbm_to_vmem [thread:$0]  %s0, 256, %s23, [#allocation4], 32, 32, 2
    $region5: #{tpu_custom_call.1} parent=1 // pred_fallthru
      _
    // Predicated region
    $region6: #{tpu_custom_call.1} parent=1 // pred_check
      _
    $region7: #{tpu_custom_call.1} parent=1 // pred_check_branch
      %30 = sbr.rel (0) target = $region9
    $region8: #{tpu_custom_call.1} parent=1 // pred_region
      %s32 = ssub.s32 32, 32
      %33 = vsyncadd [#allocation7], %s32
      %s35 = sshll.u32 [#allocation6], 4
      %s36 = int_to_ptr.vmem [resolvable:$true] %s35
      %38 = dma.hbm_to_vmem [thread:$0]  %s1, 32, %s36, [#allocation7]
    $region9: #{tpu_custom_call.1} parent=1 // pred_fallthru
      _
    // Predicated region
    $region10: #{tpu_custom_call.1} parent=1 // pred_check
      _
    $region11: #{tpu_custom_call.1} parent=1 // pred_check_branch
      %40 = sbr.rel (0) target = $region13
    $region12: #{tpu_custom_call.1} parent=1 // pred_region
      %s42 = ssub.s32 512, 512
      %43 = vsyncadd [#allocation7], %s42
      %s44 = sshll.u32 [#allocation8], 4
      %s45 = int_to_ptr.vmem [resolvable:$true] %s44
      %50 = dma.hbm_to_vmem [thread:$0]  %s2, 512, %s45, [#allocation7], 128, 128, 8
    $region13: #{tpu_custom_call.1} parent=1 // pred_fallthru
      _
    // Predicated region
    $region14: #{tpu_custom_call.1} parent=1 // pred_check
      _
    $region15: #{tpu_custom_call.1} parent=1 // pred_check_branch
      %52 = sbr.rel (0) target = $region17
    $region16: #{tpu_custom_call.1} parent=1 // pred_region
      %s54 = ssub.s32 512, 512
      %55 = vsyncadd [#allocation10], %s54
      %s56 = sshll.u32 [#allocation9], 4
      %s57 = int_to_ptr.vmem [resolvable:$true] %s56
      %62 = dma.hbm_to_vmem [thread:$0]  %s3, 512, %s57, [#allocation10], 128, 128, 8
    $region17: #{tpu_custom_call.1} parent=1 // pred_fallthru
      _
    // Predicated region
    $region18: #{tpu_custom_call.1} parent=1 // pred_check
      _
    $region19: #{tpu_custom_call.1} parent=1 // pred_check_branch
      %64 = sbr.rel (0) target = $region21
    $region20: #{tpu_custom_call.1} parent=1 // pred_region
      _
    $region21: #{tpu_custom_call.1} parent=1 // pred_fallthru
      _
    // Predicated region
    $region22: #{tpu_custom_call.1} parent=1 // pred_check
      _
    $region23: #{tpu_custom_call.1} parent=1 // pred_check_branch
      %66 = sbr.rel (0) target = $region25
    $region24: #{tpu_custom_call.1} parent=1 // pred_region
      %67 = dma.done [#allocation4], 256
    $region25: #{tpu_custom_call.1} parent=1 // pred_fallthru
      _
    // Predicated region
    $region26: #{tpu_custom_call.1} parent=1 // pred_check
      _
    $region27: #{tpu_custom_call.1} parent=1 // pred_check_branch
      %69 = sbr.rel (0) target = $region29
    $region28: #{tpu_custom_call.1} parent=1 // pred_region
      %70 = dma.done [#allocation7], 32
    $region29: #{tpu_custom_call.1} parent=1 // pred_fallthru
      _
    // Predicated region
    $region30: #{tpu_custom_call.1} parent=1 // pred_check
      _
    $region31: #{tpu_custom_call.1} parent=1 // pred_check_branch
      %72 = sbr.rel (0) target = $region33
    $region32: #{tpu_custom_call.1} parent=1 // pred_region
      %73 = dma.done [#allocation7], 512
    $region33: #{tpu_custom_call.1} parent=1 // pred_fallthru
      _
    // Predicated region
    $region34: #{tpu_custom_call.1} parent=1 // pred_check
      _
    $region35: #{tpu_custom_call.1} parent=1 // pred_check_branch
      %75 = sbr.rel (0) target = $region37
    $region36: #{tpu_custom_call.1} parent=1 // pred_region
      %76 = dma.done [#allocation10], 512
    $region37: #{tpu_custom_call.1} parent=1 // pred_fallthru
      _
    %v77 = vld [vmem:[#allocation8] sm:$0xff]
    %v78 = vld [vmem:[#allocation8 + $0x8] sm:$0xff]
    %v79 = vld [vmem:[#allocation8 + $0x10] sm:$0xff]
    %v80 = vld [vmem:[#allocation8 + $0x18] sm:$0xff]
    %v81 = vld [vmem:[#allocation6] sm:$0x3]
    %v82 = vld [vmem:[#allocation3] sm:$0x3]
    %vm83 = vcmask 261120
    %v85 = vsel %vm83, %v81, 0
    %87 = vmatprep.subr.mxu0 0.0
    %88 = vmatpush1.msra.mxu0 0.0
    %89 = vmatprep.subr.mxu0 0.0
    %90 = vmatpush1.msra.mxu0 0.0
    %91 = vmatprep.subr.mxu0 0.0
    %92 = vmatpush1.msra.mxu0 0.0
    %93 = vmatprep.subr.mxu0 0.0
    %94 = vmatpush1.msra.mxu0 0.0
    %95 = vmatprep.subr.mxu0 0.0
    %96 = vmatpush1.msra.mxu0 0.0
    %97 = vmatprep.subr.mxu0 0.0
    %98 = vmatpush1.msra.mxu0 0.0
    %99 = vmatprep.subr.mxu0 0.0
    %100 = vmatpush1.msra.mxu0 0.0
    %101 = vmatprep.subr.mxu0 0.0
    %102 = vmatpush1.msra.mxu0 0.0
    %103 = vmatprep.subr.mxu0 0.0
    %104 = vmatpush1.msra.mxu0 0.0
    %105 = vmatprep.subr.mxu0 0.0
    %106 = vmatpush1.msra.mxu0 0.0
    %107 = vmatprep.subr.mxu0 0.0
    %108 = vmatpush1.msra.mxu0 0.0
    %109 = vmatprep.subr.mxu0 0.0
    %110 = vmatpush1.msra.mxu0 0.0
    %111 = vmatprep.subr.mxu0 0.0
    %112 = vmatpush1.msra.mxu0 %v80
    %113 = vmatprep.subr.mxu0 0.0
    %114 = vmatpush1.msra.mxu0 %v79
    %115 = vmatprep.subr.mxu0 0.0
    %116 = vmatpush1.msra.mxu0 %v78
    %117 = vmatprep.subr.mxu0 0.0
    %118 = vmatpush1.msra.mxu0 %v77
    %119 = vmatprep.subr.mxu0 0.0
    %120 = vmatpush2.msra.mxu0 0.0
    %121 = vmatprep.subr.mxu0 0.0
    %122 = vmatpush2.msra.mxu0 0.0
    %123 = vmatprep.subr.mxu0 0.0
    %124 = vmatpush2.msra.mxu0 0.0
    %125 = vmatprep.subr.mxu0 0.0
    %126 = vmatpush2.msra.mxu0 0.0
    %127 = vmatprep.subr.mxu0 0.0
    %128 = vmatpush2.msra.mxu0 0.0
    %129 = vmatprep.subr.mxu0 0.0
    %130 = vmatpush2.msra.mxu0 0.0
    %131 = vmatprep.subr.mxu0 0.0
    %132 = vmatpush2.msra.mxu0 0.0
    %133 = vmatprep.subr.mxu0 0.0
    %134 = vmatpush2.msra.mxu0 0.0
    %135 = vmatprep.subr.mxu0 0.0
    %136 = vmatpush2.msra.mxu0 0.0
    %137 = vmatprep.subr.mxu0 0.0
    %138 = vmatpush2.msra.mxu0 0.0
    %139 = vmatprep.subr.mxu0 0.0
    %140 = vmatpush2.msra.mxu0 0.0
    %141 = vmatprep.subr.mxu0 0.0
    %142 = vmatpush2.msra.mxu0 0.0
    %143 = vmatprep.subr.mxu0 0.0
    %144 = vmatpush2.msra.mxu0 0.0
    %145 = vmatprep.subr.mxu0 0.0
    %146 = vmatpush2.msra.mxu0 0.0
    %147 = vmatprep.subr.mxu0 0.0
    %148 = vmatpush2.msra.mxu0 0.0
    %149 = vmatprep.subr.mxu0 0.0
    %150 = vmatpush2.msra.mxu0 0.0
    %151 = vmatprep.mubr.f32.mxu0 0.0
    %152 = vmatmul.mubr.f32.gmra.mxu0 %v85
    %v153 = vpop.f32.mrf.mxu0
    %v154 = vadd.f32 %v82, %v153
    %v155 = vpop.f32.mrf.mxu0
    %156 = vdwg.mxu0
    %v157 = vtanh.pop %v154
    %vm158 = vcmask 254976
    %159 = vst.msk [vmem:[#allocation2] sm:$0x3] %vm158, %v157
    %s160 = scalar_lea.vmem [#allocation3], 2
    %v161 = vld [vmem:[%s160] sm:$0x3]
    %v163 = vsel %vm83, %v157, 0
    %165 = vmatprep.subr.mxu0 0.0
    %166 = vmatpush1.msra.mxu0 0.0
    %167 = vmatprep.subr.mxu0 0.0
    %168 = vmatpush1.msra.mxu0 0.0
    %169 = vmatprep.subr.mxu0 0.0
    %170 = vmatpush1.msra.mxu0 0.0
    %171 = vmatprep.subr.mxu0 0.0
    %172 = vmatpush1.msra.mxu0 0.0
    %173 = vmatprep.subr.mxu0 0.0
    %174 = vmatpush1.msra.mxu0 0.0
    %175 = vmatprep.subr.mxu0 0.0
    %176 = vmatpush1.msra.mxu0 0.0
    %177 = vmatprep.subr.mxu0 0.0
    %178 = vmatpush1.msra.mxu0 0.0
    %179 = vmatprep.subr.mxu0 0.0
    %180 = vmatpush1.msra.mxu0 0.0
    %181 = vmatprep.subr.mxu0 0.0
    %182 = vmatpush1.msra.mxu0 0.0
    %183 = vmatprep.subr.mxu0 0.0
    %184 = vmatpush1.msra.mxu0 0.0
    %185 = vmatprep.subr.mxu0 0.0
    %186 = vmatpush1.msra.mxu0 0.0
    %187 = vmatprep.subr.mxu0 0.0
    %188 = vmatpush1.msra.mxu0 0.0
    %189 = vmatprep.subr.mxu0 0.0
    %190 = vmatpush1.msra.mxu0 %v80
    %191 = vmatprep.subr.mxu0 0.0
    %192 = vmatpush1.msra.mxu0 %v79
    %193 = vmatprep.subr.mxu0 0.0
    %194 = vmatpush1.msra.mxu0 %v78
    %195 = vmatprep.subr.mxu0 0.0
    %196 = vmatpush1.msra.mxu0 %v77
    %197 = vmatprep.subr.mxu0 0.0
    %198 = vmatpush2.msra.mxu0 0.0
    %199 = vmatprep.subr.mxu0 0.0
    %200 = vmatpush2.msra.mxu0 0.0
    %201 = vmatprep.subr.mxu0 0.0
    %202 = vmatpush2.msra.mxu0 0.0
    %203 = vmatprep.subr.mxu0 0.0
    %204 = vmatpush2.msra.mxu0 0.0
    %205 = vmatprep.subr.mxu0 0.0
    %206 = vmatpush2.msra.mxu0 0.0
    %207 = vmatprep.subr.mxu0 0.0
    %208 = vmatpush2.msra.mxu0 0.0
    %209 = vmatprep.subr.mxu0 0.0
    %210 = vmatpush2.msra.mxu0 0.0
    %211 = vmatprep.subr.mxu0 0.0
    %212 = vmatpush2.msra.mxu0 0.0
    %213 = vmatprep.subr.mxu0 0.0
    %214 = vmatpush2.msra.mxu0 0.0
    %215 = vmatprep.subr.mxu0 0.0
    %216 = vmatpush2.msra.mxu0 0.0
    %217 = vmatprep.subr.mxu0 0.0
    %218 = vmatpush2.msra.mxu0 0.0
    %219 = vmatprep.subr.mxu0 0.0
    %220 = vmatpush2.msra.mxu0 0.0
    %221 = vmatprep.subr.mxu0 0.0
    %222 = vmatpush2.msra.mxu0 0.0
    %223 = vmatprep.subr.mxu0 0.0
    %224 = vmatpush2.msra.mxu0 0.0
    %225 = vmatprep.subr.mxu0 0.0
    %226 = vmatpush2.msra.mxu0 0.0
    %227 = vmatprep.subr.mxu0 0.0
    %228 = vmatpush2.msra.mxu0 0.0
    %229 = vmatprep.mubr.f32.mxu0 0.0
    %230 = vmatmul.mubr.f32.gmra.mxu0 %v163
    %v231 = vpop.f32.mrf.mxu0
    %v232 = vadd.f32 %v161, %v231
    %v233 = vpop.f32.mrf.mxu0
    %234 = vdwg.mxu0
    %v235 = vtanh.pop %v232
    %236 = vst.msk [vmem:[#allocation2 + $0x2] sm:$0x3] %vm158, %v235
    %s237 = scalar_lea.vmem [#allocation3], 4
    %v238 = vld [vmem:[%s237] sm:$0x3]
    %v240 = vsel %vm83, %v235, 0
    %242 = vmatprep.subr.mxu0 0.0
    %243 = vmatpush1.msra.mxu0 0.0
    %244 = vmatprep.subr.mxu0 0.0
    %245 = vmatpush1.msra.mxu0 0.0
    %246 = vmatprep.subr.mxu0 0.0
    %247 = vmatpush1.msra.mxu0 0.0
    %248 = vmatprep.subr.mxu0 0.0
    %249 = vmatpush1.msra.mxu0 0.0
    %250 = vmatprep.subr.mxu0 0.0
    %251 = vmatpush1.msra.mxu0 0.0
    %252 = vmatprep.subr.mxu0 0.0
    %253 = vmatpush1.msra.mxu0 0.0
    %254 = vmatprep.subr.mxu0 0.0
    %255 = vmatpush1.msra.mxu0 0.0
    %256 = vmatprep.subr.mxu0 0.0
    %257 = vmatpush1.msra.mxu0 0.0
    %258 = vmatprep.subr.mxu0 0.0
    %259 = vmatpush1.msra.mxu0 0.0
    %260 = vmatprep.subr.mxu0 0.0
    %261 = vmatpush1.msra.mxu0 0.0
    %262 = vmatprep.subr.mxu0 0.0
    %263 = vmatpush1.msra.mxu0 0.0
    %264 = vmatprep.subr.mxu0 0.0
    %265 = vmatpush1.msra.mxu0 0.0
    %266 = vmatprep.subr.mxu0 0.0
    %267 = vmatpush1.msra.mxu0 %v80
    %268 = vmatprep.subr.mxu0 0.0
    %269 = vmatpush1.msra.mxu0 %v79
    %270 = vmatprep.subr.mxu0 0.0
    %271 = vmatpush1.msra.mxu0 %v78
    %272 = vmatprep.subr.mxu0 0.0
    %273 = vmatpush1.msra.mxu0 %v77
    %274 = vmatprep.subr.mxu0 0.0
    %275 = vmatpush2.msra.mxu0 0.0
    %276 = vmatprep.subr.mxu0 0.0
    %277 = vmatpush2.msra.mxu0 0.0
    %278 = vmatprep.subr.mxu0 0.0
    %279 = vmatpush2.msra.mxu0 0.0
    %280 = vmatprep.subr.mxu0 0.0
    %281 = vmatpush2.msra.mxu0 0.0
    %282 = vmatprep.subr.mxu0 0.0
    %283 = vmatpush2.msra.mxu0 0.0
    %284 = vmatprep.subr.mxu0 0.0
    %285 = vmatpush2.msra.mxu0 0.0
    %286 = vmatprep.subr.mxu0 0.0
    %287 = vmatpush2.msra.mxu0 0.0
    %288 = vmatprep.subr.mxu0 0.0
    %289 = vmatpush2.msra.mxu0 0.0
    %290 = vmatprep.subr.mxu0 0.0
    %291 = vmatpush2.msra.mxu0 0.0
    %292 = vmatprep.subr.mxu0 0.0
    %293 = vmatpush2.msra.mxu0 0.0
    %294 = vmatprep.subr.mxu0 0.0
    %295 = vmatpush2.msra.mxu0 0.0
    %296 = vmatprep.subr.mxu0 0.0
    %297 = vmatpush2.msra.mxu0 0.0
    %298 = vmatprep.subr.mxu0 0.0
    %299 = vmatpush2.msra.mxu0 0.0
    %300 = vmatprep.subr.mxu0 0.0
    %301 = vmatpush2.msra.mxu0 0.0
    %302 = vmatprep.subr.mxu0 0.0
    %303 = vmatpush2.msra.mxu0 0.0
    %304 = vmatprep.subr.mxu0 0.0
    %305 = vmatpush2.msra.mxu0 0.0
    %306 = vmatprep.mubr.f32.mxu0 0.0
    %307 = vmatmul.mubr.f32.gmra.mxu0 %v240
    %v308 = vpop.f32.mrf.mxu0
    %v309 = vadd.f32 %v238, %v308
    %v310 = vpop.f32.mrf.mxu0
    %311 = vdwg.mxu0
    %v312 = vtanh.pop %v309
    %313 = vst.msk [vmem:[#allocation2 + $0x4] sm:$0x3] %vm158, %v312
    %s314 = scalar_lea.vmem [#allocation3], 6
    %v315 = vld [vmem:[%s314] sm:$0x3]
    %v317 = vsel %vm83, %v312, 0
    %319 = vmatprep.subr.mxu0 0.0
    %320 = vmatpush1.msra.mxu0 0.0
    %321 = vmatprep.subr.mxu0 0.0
    %322 = vmatpush1.msra.mxu0 0.0
    %323 = vmatprep.subr.mxu0 0.0
    %324 = vmatpush1.msra.mxu0 0.0
    %325 = vmatprep.subr.mxu0 0.0
    %326 = vmatpush1.msra.mxu0 0.0
    %327 = vmatprep.subr.mxu0 0.0
    %328 = vmatpush1.msra.mxu0 0.0
    %329 = vmatprep.subr.mxu0 0.0
    %330 = vmatpush1.msra.mxu0 0.0
    %331 = vmatprep.subr.mxu0 0.0
    %332 = vmatpush1.msra.mxu0 0.0
    %333 = vmatprep.subr.mxu0 0.0
    %334 = vmatpush1.msra.mxu0 0.0
    %335 = vmatprep.subr.mxu0 0.0
    %336 = vmatpush1.msra.mxu0 0.0
    %337 = vmatprep.subr.mxu0 0.0
    %338 = vmatpush1.msra.mxu0 0.0
    %339 = vmatprep.subr.mxu0 0.0
    %340 = vmatpush1.msra.mxu0 0.0
    %341 = vmatprep.subr.mxu0 0.0
    %342 = vmatpush1.msra.mxu0 0.0
    %343 = vmatprep.subr.mxu0 0.0
    %344 = vmatpush1.msra.mxu0 %v80
    %345 = vmatprep.subr.mxu0 0.0
    %346 = vmatpush1.msra.mxu0 %v79
    %347 = vmatprep.subr.mxu0 0.0
    %348 = vmatpush1.msra.mxu0 %v78
    %349 = vmatprep.subr.mxu0 0.0
    %350 = vmatpush1.msra.mxu0 %v77
    %351 = vmatprep.subr.mxu0 0.0
    %352 = vmatpush2.msra.mxu0 0.0
    %353 = vmatprep.subr.mxu0 0.0
    %354 = vmatpush2.msra.mxu0 0.0
    %355 = vmatprep.subr.mxu0 0.0
    %356 = vmatpush2.msra.mxu0 0.0
    %357 = vmatprep.subr.mxu0 0.0
    %358 = vmatpush2.msra.mxu0 0.0
    %359 = vmatprep.subr.mxu0 0.0
    %360 = vmatpush2.msra.mxu0 0.0
    %361 = vmatprep.subr.mxu0 0.0
    %362 = vmatpush2.msra.mxu0 0.0
    %363 = vmatprep.subr.mxu0 0.0
    %364 = vmatpush2.msra.mxu0 0.0
    %365 = vmatprep.subr.mxu0 0.0
    %366 = vmatpush2.msra.mxu0 0.0
    %367 = vmatprep.subr.mxu0 0.0
    %368 = vmatpush2.msra.mxu0 0.0
    %369 = vmatprep.subr.mxu0 0.0
    %370 = vmatpush2.msra.mxu0 0.0
    %371 = vmatprep.subr.mxu0 0.0
    %372 = vmatpush2.msra.mxu0 0.0
    %373 = vmatprep.subr.mxu0 0.0
    %374 = vmatpush2.msra.mxu0 0.0
    %375 = vmatprep.subr.mxu0 0.0
    %376 = vmatpush2.msra.mxu0 0.0
    %377 = vmatprep.subr.mxu0 0.0
    %378 = vmatpush2.msra.mxu0 0.0
    %379 = vmatprep.subr.mxu0 0.0
    %380 = vmatpush2.msra.mxu0 0.0
    %381 = vmatprep.subr.mxu0 0.0
    %382 = vmatpush2.msra.mxu0 0.0
    %383 = vmatprep.mubr.f32.mxu0 0.0
    %384 = vmatmul.mubr.f32.gmra.mxu0 %v317
    %v385 = vpop.f32.mrf.mxu0
    %v386 = vadd.f32 %v315, %v385
    %v387 = vpop.f32.mrf.mxu0
    %388 = vdwg.mxu0
    %v389 = vtanh.pop %v386
    %390 = vst.msk [vmem:[#allocation2 + $0x6] sm:$0x3] %vm158, %v389
    %s391 = scalar_lea.vmem [#allocation3], 8
    %v392 = vld [vmem:[%s391] sm:$0x3]
    %v394 = vsel %vm83, %v389, 0
    %396 = vmatprep.subr.mxu0 0.0
    %397 = vmatpush1.msra.mxu0 0.0
    %398 = vmatprep.subr.mxu0 0.0
    %399 = vmatpush1.msra.mxu0 0.0
    %400 = vmatprep.subr.mxu0 0.0
    %401 = vmatpush1.msra.mxu0 0.0
    %402 = vmatprep.subr.mxu0 0.0
    %403 = vmatpush1.msra.mxu0 0.0
    %404 = vmatprep.subr.mxu0 0.0
    %405 = vmatpush1.msra.mxu0 0.0
    %406 = vmatprep.subr.mxu0 0.0
    %407 = vmatpush1.msra.mxu0 0.0
    %408 = vmatprep.subr.mxu0 0.0
    %409 = vmatpush1.msra.mxu0 0.0
    %410 = vmatprep.subr.mxu0 0.0
    %411 = vmatpush1.msra.mxu0 0.0
    %412 = vmatprep.subr.mxu0 0.0
    %413 = vmatpush1.msra.mxu0 0.0
    %414 = vmatprep.subr.mxu0 0.0
    %415 = vmatpush1.msra.mxu0 0.0
    %416 = vmatprep.subr.mxu0 0.0
    %417 = vmatpush1.msra.mxu0 0.0
    %418 = vmatprep.subr.mxu0 0.0
    %419 = vmatpush1.msra.mxu0 0.0
    %420 = vmatprep.subr.mxu0 0.0
    %421 = vmatpush1.msra.mxu0 %v80
    %422 = vmatprep.subr.mxu0 0.0
    %423 = vmatpush1.msra.mxu0 %v79
    %424 = vmatprep.subr.mxu0 0.0
    %425 = vmatpush1.msra.mxu0 %v78
    %426 = vmatprep.subr.mxu0 0.0
    %427 = vmatpush1.msra.mxu0 %v77
    %428 = vmatprep.subr.mxu0 0.0
    %429 = vmatpush2.msra.mxu0 0.0
    %430 = vmatprep.subr.mxu0 0.0
    %431 = vmatpush2.msra.mxu0 0.0
    %432 = vmatprep.subr.mxu0 0.0
    %433 = vmatpush2.msra.mxu0 0.0
    %434 = vmatprep.subr.mxu0 0.0
    %435 = vmatpush2.msra.mxu0 0.0
    %436 = vmatprep.subr.mxu0 0.0
    %437 = vmatpush2.msra.mxu0 0.0
    %438 = vmatprep.subr.mxu0 0.0
    %439 = vmatpush2.msra.mxu0 0.0
    %440 = vmatprep.subr.mxu0 0.0
    %441 = vmatpush2.msra.mxu0 0.0
    %442 = vmatprep.subr.mxu0 0.0
    %443 = vmatpush2.msra.mxu0 0.0
    %444 = vmatprep.subr.mxu0 0.0
    %445 = vmatpush2.msra.mxu0 0.0
    %446 = vmatprep.subr.mxu0 0.0
    %447 = vmatpush2.msra.mxu0 0.0
    %448 = vmatprep.subr.mxu0 0.0
    %449 = vmatpush2.msra.mxu0 0.0
    %450 = vmatprep.subr.mxu0 0.0
    %451 = vmatpush2.msra.mxu0 0.0
    %452 = vmatprep.subr.mxu0 0.0
    %453 = vmatpush2.msra.mxu0 0.0
    %454 = vmatprep.subr.mxu0 0.0
    %455 = vmatpush2.msra.mxu0 0.0
    %456 = vmatprep.subr.mxu0 0.0
    %457 = vmatpush2.msra.mxu0 0.0
    %458 = vmatprep.subr.mxu0 0.0
    %459 = vmatpush2.msra.mxu0 0.0
    %460 = vmatprep.mubr.f32.mxu0 0.0
    %461 = vmatmul.mubr.f32.gmra.mxu0 %v394
    %v462 = vpop.f32.mrf.mxu0
    %v463 = vadd.f32 %v392, %v462
    %v464 = vpop.f32.mrf.mxu0
    %465 = vdwg.mxu0
    %v466 = vtanh.pop %v463
    %467 = vst.msk [vmem:[#allocation2 + $0x8] sm:$0x3] %vm158, %v466
    %s468 = scalar_lea.vmem [#allocation3], 10
    %v469 = vld [vmem:[%s468] sm:$0x3]
    %v471 = vsel %vm83, %v466, 0
    %473 = vmatprep.subr.mxu0 0.0
    %474 = vmatpush1.msra.mxu0 0.0
    %475 = vmatprep.subr.mxu0 0.0
    %476 = vmatpush1.msra.mxu0 0.0
    %477 = vmatprep.subr.mxu0 0.0
    %478 = vmatpush1.msra.mxu0 0.0
    %479 = vmatprep.subr.mxu0 0.0
    %480 = vmatpush1.msra.mxu0 0.0
    %481 = vmatprep.subr.mxu0 0.0
    %482 = vmatpush1.msra.mxu0 0.0
    %483 = vmatprep.subr.mxu0 0.0
    %484 = vmatpush1.msra.mxu0 0.0
    %485 = vmatprep.subr.mxu0 0.0
    %486 = vmatpush1.msra.mxu0 0.0
    %487 = vmatprep.subr.mxu0 0.0
    %488 = vmatpush1.msra.mxu0 0.0
    %489 = vmatprep.subr.mxu0 0.0
    %490 = vmatpush1.msra.mxu0 0.0
    %491 = vmatprep.subr.mxu0 0.0
    %492 = vmatpush1.msra.mxu0 0.0
    %493 = vmatprep.subr.mxu0 0.0
    %494 = vmatpush1.msra.mxu0 0.0
    %495 = vmatprep.subr.mxu0 0.0
    %496 = vmatpush1.msra.mxu0 0.0
    %497 = vmatprep.subr.mxu0 0.0
    %498 = vmatpush1.msra.mxu0 %v80
    %499 = vmatprep.subr.mxu0 0.0
    %500 = vmatpush1.msra.mxu0 %v79
    %501 = vmatprep.subr.mxu0 0.0
    %502 = vmatpush1.msra.mxu0 %v78
    %503 = vmatprep.subr.mxu0 0.0
    %504 = vmatpush1.msra.mxu0 %v77
    %505 = vmatprep.subr.mxu0 0.0
    %506 = vmatpush2.msra.mxu0 0.0
    %507 = vmatprep.subr.mxu0 0.0
    %508 = vmatpush2.msra.mxu0 0.0
    %509 = vmatprep.subr.mxu0 0.0
    %510 = vmatpush2.msra.mxu0 0.0
    %511 = vmatprep.subr.mxu0 0.0
    %512 = vmatpush2.msra.mxu0 0.0
    %513 = vmatprep.subr.mxu0 0.0
    %514 = vmatpush2.msra.mxu0 0.0
    %515 = vmatprep.subr.mxu0 0.0
    %516 = vmatpush2.msra.mxu0 0.0
    %517 = vmatprep.subr.mxu0 0.0
    %518 = vmatpush2.msra.mxu0 0.0
    %519 = vmatprep.subr.mxu0 0.0
    %520 = vmatpush2.msra.mxu0 0.0
    %521 = vmatprep.subr.mxu0 0.0
    %522 = vmatpush2.msra.mxu0 0.0
    %523 = vmatprep.subr.mxu0 0.0
    %524 = vmatpush2.msra.mxu0 0.0
    %525 = vmatprep.subr.mxu0 0.0
    %526 = vmatpush2.msra.mxu0 0.0
    %527 = vmatprep.subr.mxu0 0.0
    %528 = vmatpush2.msra.mxu0 0.0
    %529 = vmatprep.subr.mxu0 0.0
    %530 = vmatpush2.msra.mxu0 0.0
    %531 = vmatprep.subr.mxu0 0.0
    %532 = vmatpush2.msra.mxu0 0.0
    %533 = vmatprep.subr.mxu0 0.0
    %534 = vmatpush2.msra.mxu0 0.0
    %535 = vmatprep.subr.mxu0 0.0
    %536 = vmatpush2.msra.mxu0 0.0
    %537 = vmatprep.mubr.f32.mxu0 0.0
    %538 = vmatmul.mubr.f32.gmra.mxu0 %v471
    %v539 = vpop.f32.mrf.mxu0
    %v540 = vadd.f32 %v469, %v539
    %v541 = vpop.f32.mrf.mxu0
    %542 = vdwg.mxu0
    %v543 = vtanh.pop %v540
    %544 = vst.msk [vmem:[#allocation2 + $0xa] sm:$0x3] %vm158, %v543
    %s545 = scalar_lea.vmem [#allocation3], 12
    %v546 = vld [vmem:[%s545] sm:$0x3]
    %v548 = vsel %vm83, %v543, 0
    %550 = vmatprep.subr.mxu0 0.0
    %551 = vmatpush1.msra.mxu0 0.0
    %552 = vmatprep.subr.mxu0 0.0
    %553 = vmatpush1.msra.mxu0 0.0
    %554 = vmatprep.subr.mxu0 0.0
    %555 = vmatpush1.msra.mxu0 0.0
    %556 = vmatprep.subr.mxu0 0.0
    %557 = vmatpush1.msra.mxu0 0.0
    %558 = vmatprep.subr.mxu0 0.0
    %559 = vmatpush1.msra.mxu0 0.0
    %560 = vmatprep.subr.mxu0 0.0
    %561 = vmatpush1.msra.mxu0 0.0
    %562 = vmatprep.subr.mxu0 0.0
    %563 = vmatpush1.msra.mxu0 0.0
    %564 = vmatprep.subr.mxu0 0.0
    %565 = vmatpush1.msra.mxu0 0.0
    %566 = vmatprep.subr.mxu0 0.0
    %567 = vmatpush1.msra.mxu0 0.0
    %568 = vmatprep.subr.mxu0 0.0
    %569 = vmatpush1.msra.mxu0 0.0
    %570 = vmatprep.subr.mxu0 0.0
    %571 = vmatpush1.msra.mxu0 0.0
    %572 = vmatprep.subr.mxu0 0.0
    %573 = vmatpush1.msra.mxu0 0.0
    %574 = vmatprep.subr.mxu0 0.0
    %575 = vmatpush1.msra.mxu0 %v80
    %576 = vmatprep.subr.mxu0 0.0
    %577 = vmatpush1.msra.mxu0 %v79
    %578 = vmatprep.subr.mxu0 0.0
    %579 = vmatpush1.msra.mxu0 %v78
    %580 = vmatprep.subr.mxu0 0.0
    %581 = vmatpush1.msra.mxu0 %v77
    %582 = vmatprep.subr.mxu0 0.0
    %583 = vmatpush2.msra.mxu0 0.0
    %584 = vmatprep.subr.mxu0 0.0
    %585 = vmatpush2.msra.mxu0 0.0
    %586 = vmatprep.subr.mxu0 0.0
    %587 = vmatpush2.msra.mxu0 0.0
    %588 = vmatprep.subr.mxu0 0.0
    %589 = vmatpush2.msra.mxu0 0.0
    %590 = vmatprep.subr.mxu0 0.0
    %591 = vmatpush2.msra.mxu0 0.0
    %592 = vmatprep.subr.mxu0 0.0
    %593 = vmatpush2.msra.mxu0 0.0
    %594 = vmatprep.subr.mxu0 0.0
    %595 = vmatpush2.msra.mxu0 0.0
    %596 = vmatprep.subr.mxu0 0.0
    %597 = vmatpush2.msra.mxu0 0.0
    %598 = vmatprep.subr.mxu0 0.0
    %599 = vmatpush2.msra.mxu0 0.0
    %600 = vmatprep.subr.mxu0 0.0
    %601 = vmatpush2.msra.mxu0 0.0
    %602 = vmatprep.subr.mxu0 0.0
    %603 = vmatpush2.msra.mxu0 0.0
    %604 = vmatprep.subr.mxu0 0.0
    %605 = vmatpush2.msra.mxu0 0.0
    %606 = vmatprep.subr.mxu0 0.0
    %607 = vmatpush2.msra.mxu0 0.0
    %608 = vmatprep.subr.mxu0 0.0
    %609 = vmatpush2.msra.mxu0 0.0
    %610 = vmatprep.subr.mxu0 0.0
    %611 = vmatpush2.msra.mxu0 0.0
    %612 = vmatprep.subr.mxu0 0.0
    %613 = vmatpush2.msra.mxu0 0.0
    %614 = vmatprep.mubr.f32.mxu0 0.0
    %615 = vmatmul.mubr.f32.gmra.mxu0 %v548
    %v616 = vpop.f32.mrf.mxu0
    %v617 = vadd.f32 %v546, %v616
    %v618 = vpop.f32.mrf.mxu0
    %619 = vdwg.mxu0
    %v620 = vtanh.pop %v617
    %621 = vst.msk [vmem:[#allocation2 + $0xc] sm:$0x3] %vm158, %v620
    %s622 = scalar_lea.vmem [#allocation3], 14
    %v623 = vld [vmem:[%s622] sm:$0x3]
    %v625 = vsel %vm83, %v620, 0
    %627 = vmatprep.subr.mxu0 0.0
    %628 = vmatpush1.msra.mxu0 0.0
    %629 = vmatprep.subr.mxu0 0.0
    %630 = vmatpush1.msra.mxu0 0.0
    %631 = vmatprep.subr.mxu0 0.0
    %632 = vmatpush1.msra.mxu0 0.0
    %633 = vmatprep.subr.mxu0 0.0
    %634 = vmatpush1.msra.mxu0 0.0
    %635 = vmatprep.subr.mxu0 0.0
    %636 = vmatpush1.msra.mxu0 0.0
    %637 = vmatprep.subr.mxu0 0.0
    %638 = vmatpush1.msra.mxu0 0.0
    %639 = vmatprep.subr.mxu0 0.0
    %640 = vmatpush1.msra.mxu0 0.0
    %641 = vmatprep.subr.mxu0 0.0
    %642 = vmatpush1.msra.mxu0 0.0
    %643 = vmatprep.subr.mxu0 0.0
    %644 = vmatpush1.msra.mxu0 0.0
    %645 = vmatprep.subr.mxu0 0.0
    %646 = vmatpush1.msra.mxu0 0.0
    %647 = vmatprep.subr.mxu0 0.0
    %648 = vmatpush1.msra.mxu0 0.0
    %649 = vmatprep.subr.mxu0 0.0
    %650 = vmatpush1.msra.mxu0 0.0
    %651 = vmatprep.subr.mxu0 0.0
    %652 = vmatpush1.msra.mxu0 %v80
    %653 = vmatprep.subr.mxu0 0.0
    %654 = vmatpush1.msra.mxu0 %v79
    %655 = vmatprep.subr.mxu0 0.0
    %656 = vmatpush1.msra.mxu0 %v78
    %657 = vmatprep.subr.mxu0 0.0
    %658 = vmatpush1.msra.mxu0 %v77
    %659 = vmatprep.subr.mxu0 0.0
    %660 = vmatpush2.msra.mxu0 0.0
    %661 = vmatprep.subr.mxu0 0.0
    %662 = vmatpush2.msra.mxu0 0.0
    %663 = vmatprep.subr.mxu0 0.0
    %664 = vmatpush2.msra.mxu0 0.0
    %665 = vmatprep.subr.mxu0 0.0
    %666 = vmatpush2.msra.mxu0 0.0
    %667 = vmatprep.subr.mxu0 0.0
    %668 = vmatpush2.msra.mxu0 0.0
    %669 = vmatprep.subr.mxu0 0.0
    %670 = vmatpush2.msra.mxu0 0.0
    %671 = vmatprep.subr.mxu0 0.0
    %672 = vmatpush2.msra.mxu0 0.0
    %673 = vmatprep.subr.mxu0 0.0
    %674 = vmatpush2.msra.mxu0 0.0
    %675 = vmatprep.subr.mxu0 0.0
    %676 = vmatpush2.msra.mxu0 0.0
    %677 = vmatprep.subr.mxu0 0.0
    %678 = vmatpush2.msra.mxu0 0.0
    %679 = vmatprep.subr.mxu0 0.0
    %680 = vmatpush2.msra.mxu0 0.0
    %681 = vmatprep.subr.mxu0 0.0
    %682 = vmatpush2.msra.mxu0 0.0
    %683 = vmatprep.subr.mxu0 0.0
    %684 = vmatpush2.msra.mxu0 0.0
    %685 = vmatprep.subr.mxu0 0.0
    %686 = vmatpush2.msra.mxu0 0.0
    %687 = vmatprep.subr.mxu0 0.0
    %688 = vmatpush2.msra.mxu0 0.0
    %689 = vmatprep.subr.mxu0 0.0
    %690 = vmatpush2.msra.mxu0 0.0
    %691 = vmatprep.mubr.f32.mxu0 0.0
    %692 = vmatmul.mubr.f32.gmra.mxu0 %v625
    %v693 = vpop.f32.mrf.mxu0
    %v694 = vadd.f32 %v623, %v693
    %v695 = vpop.f32.mrf.mxu0
    %696 = vdwg.mxu0
    %v697 = vtanh.pop %v694
    %698 = vst.msk [vmem:[#allocation2 + $0xe] sm:$0x3] %vm158, %v697
    %699 = vst.msk [vmem:[#allocation12] sm:$0x3] %vm158, %v697
    %v700 = vld [vmem:[#allocation2] sm:$0xff]
    %v701 = vld [vmem:[#allocation2 + $0x8] sm:$0xff]
    %v702 = vld [vmem:[#allocation9] sm:$0xff]
    %v703 = vld [vmem:[#allocation9 + $0x8] sm:$0xff]
    %v704 = vld [vmem:[#allocation9 + $0x10] sm:$0xff]
    %v705 = vld [vmem:[#allocation9 + $0x18] sm:$0xff]
    %v706 = vld [vmem:[%s4] sm:$0x1]
    %v708 = vlaneseq
    %v709 = vshrl.u32 %v708, 7
    %v710 = vsub.s32 0, %v709
    %v711 = vrot.slane %v706, %v710
    %v714 = vsel %vm83, %v700, 0
    %v717 = vsel %vm83, %v701, 0
    %719 = vmatprep.subr.mxu0 0.0
    %720 = vmatpush1.msra.mxu0 0.0
    %721 = vmatprep.subr.mxu0 0.0
    %722 = vmatpush1.msra.mxu0 0.0
    %723 = vmatprep.subr.mxu0 0.0
    %724 = vmatpush1.msra.mxu0 0.0
    %725 = vmatprep.subr.mxu0 0.0
    %726 = vmatpush1.msra.mxu0 0.0
    %727 = vmatprep.subr.mxu0 0.0
    %728 = vmatpush1.msra.mxu0 0.0
    %729 = vmatprep.subr.mxu0 0.0
    %730 = vmatpush1.msra.mxu0 0.0
    %731 = vmatprep.subr.mxu0 0.0
    %732 = vmatpush1.msra.mxu0 0.0
    %733 = vmatprep.subr.mxu0 0.0
    %734 = vmatpush1.msra.mxu0 0.0
    %735 = vmatprep.subr.mxu0 0.0
    %736 = vmatpush1.msra.mxu0 0.0
    %737 = vmatprep.subr.mxu0 0.0
    %738 = vmatpush1.msra.mxu0 0.0
    %739 = vmatprep.subr.mxu0 0.0
    %740 = vmatpush1.msra.mxu0 0.0
    %741 = vmatprep.subr.mxu0 0.0
    %742 = vmatpush1.msra.mxu0 0.0
    %743 = vmatprep.subr.mxu0 0.0
    %744 = vmatpush1.msra.mxu0 %v705
    %745 = vmatprep.subr.mxu0 0.0
    %746 = vmatpush1.msra.mxu0 %v704
    %747 = vmatprep.subr.mxu0 0.0
    %748 = vmatpush1.msra.mxu0 %v703
    %749 = vmatprep.subr.mxu0 0.0
    %750 = vmatpush1.msra.mxu0 %v702
    %751 = vmatprep.subr.mxu0 0.0
    %752 = vmatpush2.msra.mxu0 0.0
    %753 = vmatprep.subr.mxu0 0.0
    %754 = vmatpush2.msra.mxu0 0.0
    %755 = vmatprep.subr.mxu0 0.0
    %756 = vmatpush2.msra.mxu0 0.0
    %757 = vmatprep.subr.mxu0 0.0
    %758 = vmatpush2.msra.mxu0 0.0
    %759 = vmatprep.subr.mxu0 0.0
    %760 = vmatpush2.msra.mxu0 0.0
    %761 = vmatprep.subr.mxu0 0.0
    %762 = vmatpush2.msra.mxu0 0.0
    %763 = vmatprep.subr.mxu0 0.0
    %764 = vmatpush2.msra.mxu0 0.0
    %765 = vmatprep.subr.mxu0 0.0
    %766 = vmatpush2.msra.mxu0 0.0
    %767 = vmatprep.subr.mxu0 0.0
    %768 = vmatpush2.msra.mxu0 0.0
    %769 = vmatprep.subr.mxu0 0.0
    %770 = vmatpush2.msra.mxu0 0.0
    %771 = vmatprep.subr.mxu0 0.0
    %772 = vmatpush2.msra.mxu0 0.0
    %773 = vmatprep.subr.mxu0 0.0
    %774 = vmatpush2.msra.mxu0 0.0
    %775 = vmatprep.subr.mxu0 0.0
    %776 = vmatpush2.msra.mxu0 0.0
    %777 = vmatprep.subr.mxu0 0.0
    %778 = vmatpush2.msra.mxu0 0.0
    %779 = vmatprep.subr.mxu0 0.0
    %780 = vmatpush2.msra.mxu0 0.0
    %781 = vmatprep.subr.mxu0 0.0
    %782 = vmatpush2.msra.mxu0 0.0
    %783 = vmatprep.mubr.f32.mxu0 0.0
    %784 = vmatmul.mubr.f32.gmra.mxu0 %v714
    %v785 = vpop.f32.mrf.mxu0
    %v786 = vadd.f32 %v711, %v785
    %v787 = vpop.f32.mrf.mxu0
    %788 = vmatprep.mubr.f32.mxu0 0.0
    %789 = vmatmul.mubr.f32.gmra.mxu0 %v717
    %v790 = vpop.f32.mrf.mxu0
    %v791 = vadd.f32 %v711, %v790
    %v792 = vpop.f32.mrf.mxu0
    %793 = vdwg.mxu0
    %794 = vst [vmem:[#allocation11] sm:$0xff] %v786
    %795 = vst [vmem:[#allocation11 + $0x8] sm:$0xff] %v791
    // Predicated region
    $region38: #{tpu_custom_call.1} parent=1 // pred_check
      _
    $region39: #{tpu_custom_call.1} parent=1 // pred_check_branch
      %797 = sbr.rel (0) target = $region41
    $region40: #{tpu_custom_call.1} parent=1 // pred_region
      %s799 = ssub.s32 256, 256
      %800 = vsyncadd [#allocation5], %s799
      %s801 = sshll.u32 [#allocation11], 4
      %s802 = int_to_ptr.vmem [resolvable:$true] %s801
      %807 = dma.vmem_to_hbm [thread:$0]  %s802, 256, %s5, [#allocation5], 128, 128, 8
    $region41: #{tpu_custom_call.1} parent=1 // pred_fallthru
      _
    // Predicated region
    $region42: #{tpu_custom_call.1} parent=1 // pred_check
      _
    $region43: #{tpu_custom_call.1} parent=1 // pred_check_branch
      %809 = sbr.rel (0) target = $region45
    $region44: #{tpu_custom_call.1} parent=1 // pred_region
      %s811 = ssub.s32 32, 32
      %812 = vsyncadd [#allocation13], %s811
      %s814 = sshll.u32 [#allocation12], 4
      %s815 = int_to_ptr.vmem [resolvable:$true] %s814
      %817 = dma.vmem_to_hbm [thread:$0]  %s815, 32, %s6, [#allocation13]
    $region45: #{tpu_custom_call.1} parent=1 // pred_fallthru
      _
    // Predicated region
    $region46: #{tpu_custom_call.1} parent=1 // pred_check
      _
    $region47: #{tpu_custom_call.1} parent=1 // pred_check_branch
      %819 = sbr.rel (0) target = $region49
    $region48: #{tpu_custom_call.1} parent=1 // pred_region
      %820 = dma.done [#allocation5], 256
    $region49: #{tpu_custom_call.1} parent=1 // pred_fallthru
      _
    // Predicated region
    $region50: #{tpu_custom_call.1} parent=1 // pred_check
      _
    $region51: #{tpu_custom_call.1} parent=1 // pred_check_branch
      %822 = sbr.rel (0) target = $region53
    $region52: #{tpu_custom_call.1} parent=1 // pred_region
      %823 = dma.done [#allocation13], 32
    $region53: #{tpu_custom_call.1} parent=1 // pred_fallthru
      _
    %824 = vsyncpa [#allocation4], 1
    %825 = vsyncpa [#allocation7], 1
    %826 = vsyncpa [#allocation10], 1
    %827 = vsyncpa [#allocation5], 1
    %828 = vsyncpa [#allocation13], 1

</llo_original>
